<compile_context>
chip_gen: v7x
topology: tpu7x:2x2x1
jax: 0.10.0
libtpu: 0.0.40
codegen_flags: <defaults>
</compile_context>

<pallas_src>
import functools

import jax
import jax.numpy as jnp
from jax.experimental import pallas as pl
from jax.experimental.pallas import tpu as pltpu


def _round_up(x, m):
    return ((x + m - 1) // m) * m


def _choose_tile_n(n, c, itemsize):
    """Largest row tile whose double-buffered pred block stays VMEM-friendly."""
    budget_per_buffer = 4 << 20                      # 4 MiB/buffer -> 8 MiB dbl-buffered
    rows = budget_per_buffer // max(1, c * itemsize)
    rows = max(8, min(int(rows), 1024))
    rows = (rows // 8) * 8                           # sublane (8) alignment
    return min(rows, _round_up(n, 8))


def _ce_partial_kernel(pred_ref, label_ref, out_ref, *, n_total, ignore_index):
    # pred_ref:  (TILE_N, C) logits tile (any float dtype)
    # label_ref: (TILE_N, 1) int32 class indices (or ignore_index)
    # out_ref:   (1, 1) float32 in SMEM — this tile's partial loss sum
    i = pl.program_id(0)

    pred = pred_ref[...].astype(jnp.float32)                       # (T, C)
    label = label_ref[...]                                          # (T, 1)
    tn, c = pred.shape

    # validity: inside the true N (last tile may be padded) and not ignored
    row_in_tile = jax.lax.broadcasted_iota(jnp.int32, (tn, 1), 0)   # (T, 1)
    global_row = i * tn + row_in_tile
    valid = jnp.logical_and(global_row < n_total, label != ignore_index)

    # numerically stable logsumexp per row
    row_max = jnp.max(pred, axis=-1, keepdims=True)                 # (T, 1)
    lse = row_max + jnp.log(jnp.sum(jnp.exp(pred - row_max),
                                    axis=-1, keepdims=True))        # (T, 1)

    # gather pred[i, label[i]] with a select (no one-hot float multiply)
    cls_ids = jax.lax.broadcasted_iota(jnp.int32, (tn, c), dimension=1)
    picked = jnp.sum(jnp.where(cls_ids == label, pred, 0.0),
                     axis=-1, keepdims=True)                        # (T, 1)

    # masked per-row loss; jnp.where keeps padded-row garbage/NaN out of the sum
    loss = jnp.where(valid, lse - picked, 0.0)                      # (T, 1)

    out_ref[0, 0] = jnp.sum(loss)


def cross_entropy_loss(pred, label, *, ignore_index=-100, loss_weight=1.0,
                       tile_n=None):
    """Pallas equivalent of CrossEntropyLoss()(cls_score, label) with defaults."""
    n, c = pred.shape
    label2d = label.reshape(n, 1).astype(jnp.int32)

    if tile_n is None:
        tile_n = _choose_tile_n(n, c, pred.dtype.itemsize)
    tile_n = max(8, (tile_n // 8) * 8)
    num_tiles = pl.cdiv(n, tile_n)

    kernel = functools.partial(
        _ce_partial_kernel, n_total=n, ignore_index=int(ignore_index))

    itemsize = pred.dtype.itemsize
    cost = pl.CostEstimate(
        flops=6 * n * c,                 # max/sub/exp-add/sum + select/sum + row ops
        transcendentals=n * c + n,       # exp per element, log per row
        bytes_accessed=n * c * itemsize + n * 4 + num_tiles * 4,
    )

    partials = pl.pallas_call(
        kernel,
        out_shape=jax.ShapeDtypeStruct((num_tiles, 1), jnp.float32),
        grid=(num_tiles,),
        in_specs=[
            pl.BlockSpec((tile_n, c), lambda i: (i, 0)),   # pred tile (VMEM)
            pl.BlockSpec((tile_n, 1), lambda i: (i, 0)),   # label tile (VMEM)
        ],
        out_specs=pl.BlockSpec((1, 1), lambda i: (i, 0),
                               memory_space=pltpu.SMEM),
        compiler_params=pltpu.CompilerParams(
            dimension_semantics=("parallel",)),
        cost_estimate=cost,
    )(pred, label2d)

    # 'mean' with avg_non_ignore=False divides by the TOTAL number of rows N.
    total = jnp.sum(partials)
    return loss_weight * total / jnp.float32(n)


def _reference(pred, label, ignore_index=-100, loss_weight=1.0):
    # pure-JAX mirror of F.cross_entropy(reduction='none') + mean over all rows
    pred = pred.astype(jnp.float32)
    lse = jax.nn.logsumexp(pred, axis=-1)
    safe_label = jnp.where(label == ignore_index, 0, label)
    picked = jnp.take_along_axis(pred, safe_label[:, None], axis=-1)[:, 0]
    loss = lse - picked
    loss = jnp.where(label == ignore_index, 0.0, loss)
    return loss_weight * jnp.mean(loss)


# TODO(synk): use_sigmoid / use_mask branches (binary_cross_entropy,
# mask_cross_entropy), class_weight, sample weights and avg_non_ignore are not
# exercised by the default module config and are not implemented here.

if __name__ == "__main__":
    key = jax.random.PRNGKey(0)
    k1, k2 = jax.random.split(key)

    N, C = 100, 32                                  # small, ragged vs tile_n=32
    cls_score = jax.random.normal(k1, (N, C), dtype=jnp.float32) * 2.0
    label = jax.random.randint(k2, (N,), 0, C, dtype=jnp.int32)
    # exercise the ignore_index path
    label = label.at[3].set(-100)
    label = label.at[17].set(-100)

    ref = _reference(cls_score, label)

    # default (auto) tile size: single tile with padded rows masked
    loss_auto = cross_entropy_loss(cls_score, label)
    jax.block_until_ready(loss_auto)
    assert jnp.allclose(loss_auto, ref, rtol=1e-5, atol=1e-5), (loss_auto, ref)

    # forced small tile: multi-tile grid with a ragged last tile
    loss_tiled = cross_entropy_loss(cls_score, label, tile_n=32)
    jax.block_until_ready(loss_tiled)
    assert jnp.allclose(loss_tiled, ref, rtol=1e-5, atol=1e-5), (loss_tiled, ref)

    print("KERNEL_OK")
</pallas_src>

<mosaic_0001>
module attributes {stable_mosaic.version = 11 : i64} {
  func.func @_ce_partial_kernel(%arg0: i32, %arg1: memref<104x32xf32, #tpu.memory_space<vmem>>, %arg2: memref<104x1xi32, #tpu.memory_space<vmem>>, %arg3: memref<1x1xf32, #tpu.memory_space<smem>>) attributes {dimension_semantics = [#tpu.dimension_semantics<parallel>], iteration_bounds = array<i64: 1>, scalar_prefetch = 0 : i64, scratch_operands = 0 : i64, tpu.core_type = #tpu.core_type<tc>, window_params = [{transform_indices = @transform_0, window_bounds = array<i64: 104, 32>}, {transform_indices = @transform_1, window_bounds = array<i64: 104, 1>}, {transform_indices = @transform_2, window_bounds = array<i64: 1, 1>}]} {
    %c0 = arith.constant 0 : index
    %c0_0 = arith.constant 0 : index
    %0 = vector.load %arg1[%c0, %c0_0] : memref<104x32xf32, #tpu.memory_space<vmem>>, vector<104x32xf32>
    %c0_1 = arith.constant 0 : index
    %c0_2 = arith.constant 0 : index
    %1 = vector.load %arg2[%c0_1, %c0_2] : memref<104x1xi32, #tpu.memory_space<vmem>>, vector<104x1xi32>
    %2 = tpu.iota {dimensions = array<i32: 0>} : vector<104x1xi32>
    %c104_i32 = arith.constant 104 : i32
    %3 = arith.muli %arg0, %c104_i32 : i32
    %4 = vector.broadcast %3 : i32 to vector<104x1xi32>
    %5 = arith.addi %4, %2 : vector<104x1xi32>
    %c100_i32 = arith.constant 100 : i32
    %6 = vector.broadcast %c100_i32 : i32 to vector<104x1xi32>
    %7 = arith.cmpi slt, %5, %6 : vector<104x1xi32>
    %c-100_i32 = arith.constant -100 : i32
    %8 = vector.broadcast %c-100_i32 : i32 to vector<104x1xi32>
    %9 = arith.cmpi ne, %1, %8 : vector<104x1xi32>
    %10 = arith.andi %7, %9 : vector<104x1xi1>
    %cst = arith.constant dense<0xFF800000> : vector<104xf32>
    %11 = vector.multi_reduction <maximumf>, %0, %cst [1] : vector<104x32xf32> to vector<104xf32>
    %12 = vector.shape_cast %11 : vector<104xf32> to vector<104x1xf32>
    %13 = vector.broadcast %12 : vector<104x1xf32> to vector<104x32xf32>
    %14 = arith.subf %0, %13 : vector<104x32xf32>
    %15 = math.exp %14 : vector<104x32xf32>
    %cst_3 = arith.constant dense<0.000000e+00> : vector<104xf32>
    %16 = vector.multi_reduction <add>, %15, %cst_3 [1] : vector<104x32xf32> to vector<104xf32>
    %17 = vector.shape_cast %16 : vector<104xf32> to vector<104x1xf32>
    %18 = math.log %17 : vector<104x1xf32>
    %19 = arith.addf %12, %18 : vector<104x1xf32>
    %20 = tpu.iota {dimensions = array<i32: 1>} : vector<104x32xi32>
    %21 = vector.broadcast %1 : vector<104x1xi32> to vector<104x32xi32>
    %22 = arith.cmpi eq, %20, %21 : vector<104x32xi32>
    %cst_4 = arith.constant 0.000000e+00 : f32
    %23 = vector.broadcast %cst_4 : f32 to vector<104x32xf32>
    %24 = arith.select %22, %0, %23 : vector<104x32xi1>, vector<104x32xf32>
    %cst_5 = arith.constant dense<0.000000e+00> : vector<104xf32>
    %25 = vector.multi_reduction <add>, %24, %cst_5 [1] : vector<104x32xf32> to vector<104xf32>
    %26 = vector.shape_cast %25 : vector<104xf32> to vector<104x1xf32>
    %27 = arith.subf %19, %26 : vector<104x1xf32>
    %cst_6 = arith.constant 0.000000e+00 : f32
    %28 = vector.broadcast %cst_6 : f32 to vector<104x1xf32>
    %29 = arith.select %10, %27, %28 : vector<104x1xi1>, vector<104x1xf32>
    %30 = vector.shape_cast %29 : vector<104x1xf32> to vector<1x104x1xf32>
    %cst_7 = arith.constant dense<0.000000e+00> : vector<1xf32>
    %31 = vector.multi_reduction <add>, %30, %cst_7 [1, 2] : vector<1x104x1xf32> to vector<1xf32>
    %32 = vector.shape_cast %31 : vector<1xf32> to vector<1x1x1xf32>
    %33 = vector.extract %32[0, 0, 0] : f32 from vector<1x1x1xf32>
    %c0_8 = arith.constant 0 : index
    %c0_9 = arith.constant 0 : index
    %34 = memref.load %arg3[%c0_8, %c0_9] : memref<1x1xf32, #tpu.memory_space<smem>>
    memref.store %33, %arg3[%c0_8, %c0_9] : memref<1x1xf32, #tpu.memory_space<smem>>
    return
  }
  func.func @transform_0(%arg0: i32) -> (i32, i32) {
    %c0_i32 = arith.constant 0 : i32
    %c0_i32_0 = arith.constant 0 : i32
    return %arg0, %c0_i32 : i32, i32
  }
  func.func @transform_1(%arg0: i32) -> (i32, i32) {
    %c0_i32 = arith.constant 0 : i32
    %c0_i32_0 = arith.constant 0 : i32
    return %arg0, %c0_i32 : i32, i32
  }
  func.func @transform_2(%arg0: i32) -> (i32, i32) {
    %c0_i32 = arith.constant 0 : i32
    %c0_i32_0 = arith.constant 0 : i32
    return %arg0, %c0_i32 : i32, i32
  }
}

</mosaic_0001>

<llo_original>
// kernel: tpu_custom_call.1
$region0: #{tpu_custom_call.1}
  #allocation0 [shape = 'u32[]', space=smem, size = 0x4, offset = 0x4, fixed_abs, tag = 'smem constant byte address 0x4 - core index']
  #allocation1 [shape = 'u32[144,128]{1,0:T(1,128)}', space=vmem, size = 0x12000, scoped, tag = 'internal scratch']
  %s0 = inlined_call_operand.vmem [shape: f32[100,32], index: 0, kind: input, shape index: {}]
  %s1 = inlined_call_operand.vmem [shape: s32[100,1], index: 1, kind: input, shape index: {}]
  %s2 = inlined_call_operand.hbm [shape: f32[1,1], index: 2, kind: output, shape index: {}]
  %s3 = sld [smem:[#allocation0]]
  $region18: #{tpu_custom_call.1} parent=0
    _
  %s5 = ssub.s32 1, %s3
  %s6 = scalar_select 0, %s5, %s3
  $region1: #{tpu_custom_call.1} parent=0
    #allocation2 [shape = 'u8[512]{0}', space=smem, size = 0x200, scoped, tag = 'output window, operand 0, single buffered']
    #allocation3 [shape = 's32[1]{0}', space=sflag, size = 0x4, scoped, tag = 'scoped memory for tpu_custom_call.1']
    %7 = vsyncpa [#allocation3], 0
    // Predicated region
    $region2: #{tpu_custom_call.1} parent=1 // pred_check
      _
    $region3: #{tpu_custom_call.1} parent=1 // pred_check_branch
      %9 = sbr.rel (0) target = $region5
    $region4: #{tpu_custom_call.1} parent=1 // pred_region
      _
    $region5: #{tpu_custom_call.1} parent=1 // pred_fallthru
      _
    // Predicated region
    $region6: #{tpu_custom_call.1} parent=1 // pred_check
      _
    $region7: #{tpu_custom_call.1} parent=1 // pred_check_branch
      %11 = sbr.rel (0) target = $region9
    $region8: #{tpu_custom_call.1} parent=1 // pred_region
      _
    $region9: #{tpu_custom_call.1} parent=1 // pred_fallthru
      _
    %v12 = vld [vmem:[%s0] sm:$0xff]
    %v13 = vld [vmem:[%s0 + $0x8] sm:$0xff]
    %v14 = vld [vmem:[%s0 + $0x10] sm:$0xff]
    %v15 = vld [vmem:[%s0 + $0x18] sm:$0xff]
    %v16 = vld [vmem:[%s0 + $0x20] sm:$0xff]
    %v17 = vld [vmem:[%s0 + $0x28] sm:$0xff]
    %v18 = vld [vmem:[%s0 + $0x30] sm:$0xff]
    %v19 = vld [vmem:[%s0 + $0x38] sm:$0xff]
    %v20 = vld [vmem:[%s0 + $0x40] sm:$0xff]
    %v21 = vld [vmem:[%s0 + $0x48] sm:$0xff]
    %v22 = vld [vmem:[%s0 + $0x50] sm:$0xff]
    %v23 = vld [vmem:[%s0 + $0x58] sm:$0xff]
    %v24 = vld [vmem:[%s0 + $0x60] sm:$0xff]
    %v25 = vld [vmem:[%s1] sm:$0xff]
    %v26 = vld [vmem:[%s1 + $0x8] sm:$0xff]
    %v27 = vld [vmem:[%s1 + $0x10] sm:$0xff]
    %v28 = vld [vmem:[%s1 + $0x18] sm:$0xff]
    %v29 = vld [vmem:[%s1 + $0x20] sm:$0xff]
    %v30 = vld [vmem:[%s1 + $0x28] sm:$0xff]
    %v31 = vld [vmem:[%s1 + $0x30] sm:$0xff]
    %v32 = vld [vmem:[%s1 + $0x38] sm:$0xff]
    %v33 = vld [vmem:[%s1 + $0x40] sm:$0xff]
    %v34 = vld [vmem:[%s1 + $0x48] sm:$0xff]
    %v35 = vld [vmem:[%s1 + $0x50] sm:$0xff]
    %v36 = vld [vmem:[%s1 + $0x58] sm:$0xff]
    %v37 = vld [vmem:[%s1 + $0x60] sm:$0xff]
    %v38 = vlaneseq
    %v39 = vshrl.u32 %v38, 7
    %v40 = vadd.s32 %v39, 8
    %v41 = vadd.s32 %v39, 16
    %v42 = vadd.s32 %v39, 24
    %v43 = vadd.s32 %v39, 32
    %v44 = vadd.s32 %v39, 40
    %v45 = vadd.s32 %v39, 48
    %v46 = vadd.s32 %v39, 56
    %v47 = vadd.s32 %v39, 64
    %v48 = vadd.s32 %v39, 72
    %v49 = vadd.s32 %v39, 80
    %v50 = vadd.s32 %v39, 88
    %v51 = vadd.s32 %v39, 96
    %s52 = smul.u32 0, 104
    %v53 = vstv %s52
    %v54 = vadd.s32 %v53, %v39
    %v55 = vadd.s32 %v53, %v40
    %v56 = vadd.s32 %v53, %v41
    %v57 = vadd.s32 %v53, %v42
    %v58 = vadd.s32 %v53, %v43
    %v59 = vadd.s32 %v53, %v44
    %v60 = vadd.s32 %v53, %v45
    %v61 = vadd.s32 %v53, %v46
    %v62 = vadd.s32 %v53, %v47
    %v63 = vadd.s32 %v53, %v48
    %v64 = vadd.s32 %v53, %v49
    %v65 = vadd.s32 %v53, %v50
    %v66 = vadd.s32 %v53, %v51
    %vm67 = vcmp.lt.s32.totalorder %v54, 100
    %vm68 = vcmp.lt.s32.totalorder %v55, 100
    %vm69 = vcmp.lt.s32.totalorder %v56, 100
    %vm70 = vcmp.lt.s32.totalorder %v57, 100
    %vm71 = vcmp.lt.s32.totalorder %v58, 100
    %vm72 = vcmp.lt.s32.totalorder %v59, 100
    %vm73 = vcmp.lt.s32.totalorder %v60, 100
    %vm74 = vcmp.lt.s32.totalorder %v61, 100
    %vm75 = vcmp.lt.s32.totalorder %v62, 100
    %vm76 = vcmp.lt.s32.totalorder %v63, 100
    %vm77 = vcmp.lt.s32.totalorder %v64, 100
    %vm78 = vcmp.lt.s32.totalorder %v65, 100
    %vm79 = vcmp.lt.s32.totalorder %v66, 100
    %vm80 = vcmp.ne.s32.totalorder %v25, 4294967196
    %vm81 = vcmp.ne.s32.totalorder %v26, 4294967196
    %vm82 = vcmp.ne.s32.totalorder %v27, 4294967196
    %vm83 = vcmp.ne.s32.totalorder %v28, 4294967196
    %vm84 = vcmp.ne.s32.totalorder %v29, 4294967196
    %vm85 = vcmp.ne.s32.totalorder %v30, 4294967196
    %vm86 = vcmp.ne.s32.totalorder %v31, 4294967196
    %vm87 = vcmp.ne.s32.totalorder %v32, 4294967196
    %vm88 = vcmp.ne.s32.totalorder %v33, 4294967196
    %vm89 = vcmp.ne.s32.totalorder %v34, 4294967196
    %vm90 = vcmp.ne.s32.totalorder %v35, 4294967196
    %vm91 = vcmp.ne.s32.totalorder %v36, 4294967196
    %vm92 = vcmp.ne.s32.totalorder %v37, 4294967196
    %vm93 = vmand %vm67, %vm80
    %vm94 = vmand %vm68, %vm81
    %vm95 = vmand %vm69, %vm82
    %vm96 = vmand %vm70, %vm83
    %vm97 = vmand %vm71, %vm84
    %vm98 = vmand %vm72, %vm85
    %vm99 = vmand %vm73, %vm86
    %vm100 = vmand %vm74, %vm87
    %vm101 = vmand %vm75, %vm88
    %vm102 = vmand %vm76, %vm89
    %vm103 = vmand %vm77, %vm90
    %vm104 = vmand %vm78, %vm91
    %vm105 = vmand %vm79, %vm92
    %vm106 = vcmask 261120
    %v107 = vsel %vm106, %v12, -inf
    %108 = vmax.xlane.f32.xlu0 %v107
    %v109 = vpop.xlane.xlu0 %108
    %v110 = vsel %vm106, %v13, -inf
    %111 = vmax.xlane.f32.xlu0 %v110
    %v112 = vpop.xlane.xlu0 %111
    %v113 = vsel %vm106, %v14, -inf
    %114 = vmax.xlane.f32.xlu0 %v113
    %v115 = vpop.xlane.xlu0 %114
    %v116 = vsel %vm106, %v15, -inf
    %117 = vmax.xlane.f32.xlu0 %v116
    %v118 = vpop.xlane.xlu0 %117
    %v119 = vsel %vm106, %v16, -inf
    %120 = vmax.xlane.f32.xlu0 %v119
    %v121 = vpop.xlane.xlu0 %120
    %v122 = vsel %vm106, %v17, -inf
    %123 = vmax.xlane.f32.xlu0 %v122
    %v124 = vpop.xlane.xlu0 %123
    %v125 = vsel %vm106, %v18, -inf
    %126 = vmax.xlane.f32.xlu0 %v125
    %v127 = vpop.xlane.xlu0 %126
    %v128 = vsel %vm106, %v19, -inf
    %129 = vmax.xlane.f32.xlu0 %v128
    %v130 = vpop.xlane.xlu0 %129
    %v131 = vsel %vm106, %v20, -inf
    %132 = vmax.xlane.f32.xlu0 %v131
    %v133 = vpop.xlane.xlu0 %132
    %v134 = vsel %vm106, %v21, -inf
    %135 = vmax.xlane.f32.xlu0 %v134
    %v136 = vpop.xlane.xlu0 %135
    %v137 = vsel %vm106, %v22, -inf
    %138 = vmax.xlane.f32.xlu0 %v137
    %v139 = vpop.xlane.xlu0 %138
    %v140 = vsel %vm106, %v23, -inf
    %141 = vmax.xlane.f32.xlu0 %v140
    %v142 = vpop.xlane.xlu0 %141
    %v143 = vsel %vm106, %v24, -inf
    %144 = vmax.xlane.f32.xlu0 %v143
    %v145 = vpop.xlane.xlu0 %144
    %v146 = vsub.f32 %v12, %v109
    %v147 = vsub.f32 %v13, %v112
    %v148 = vsub.f32 %v14, %v115
    %v149 = vsub.f32 %v15, %v118
    %v150 = vsub.f32 %v16, %v121
    %v151 = vsub.f32 %v17, %v124
    %v152 = vsub.f32 %v18, %v127
    %v153 = vsub.f32 %v19, %v130
    %v154 = vsub.f32 %v20, %v133
    %v155 = vsub.f32 %v21, %v136
    %v156 = vsub.f32 %v22, %v139
    %v157 = vsub.f32 %v23, %v142
    %v158 = vsub.f32 %v24, %v145
    %v159 = vmul.f32 %v146, 1.442695
    %v160 = vpow.pop %v159
    %v161 = vmul.f32 %v147, 1.442695
    %v162 = vpow.pop %v161
    %v163 = vmul.f32 %v148, 1.442695
    %v164 = vpow.pop %v163
    %v165 = vmul.f32 %v149, 1.442695
    %v166 = vpow.pop %v165
    %v167 = vmul.f32 %v150, 1.442695
    %v168 = vpow.pop %v167
    %v169 = vmul.f32 %v151, 1.442695
    %v170 = vpow.pop %v169
    %v171 = vmul.f32 %v152, 1.442695
    %v172 = vpow.pop %v171
    %v173 = vmul.f32 %v153, 1.442695
    %v174 = vpow.pop %v173
    %v175 = vmul.f32 %v154, 1.442695
    %v176 = vpow.pop %v175
    %v177 = vmul.f32 %v155, 1.442695
    %v178 = vpow.pop %v177
    %v179 = vmul.f32 %v156, 1.442695
    %v180 = vpow.pop %v179
    %v181 = vmul.f32 %v157, 1.442695
    %v182 = vpow.pop %v181
    %v183 = vmul.f32 %v158, 1.442695
    %v184 = vpow.pop %v183
    %v185 = vsel %vm106, %v160, 0.0
    %186 = vadd.xlane.f32.xlu0 %v185
    %v187 = vpop.xlane.xlu0 %186
    %v188 = vsel %vm106, %v162, 0.0
    %189 = vadd.xlane.f32.xlu0 %v188
    %v190 = vpop.xlane.xlu0 %189
    %v191 = vsel %vm106, %v164, 0.0
    %192 = vadd.xlane.f32.xlu0 %v191
    %v193 = vpop.xlane.xlu0 %192
    %v194 = vsel %vm106, %v166, 0.0
    %195 = vadd.xlane.f32.xlu0 %v194
    %v196 = vpop.xlane.xlu0 %195
    %v197 = vsel %vm106, %v168, 0.0
    %198 = vadd.xlane.f32.xlu0 %v197
    %v199 = vpop.xlane.xlu0 %198
    %v200 = vsel %vm106, %v170, 0.0
    %201 = vadd.xlane.f32.xlu0 %v200
    %v202 = vpop.xlane.xlu0 %201
    %v203 = vsel %vm106, %v172, 0.0
    %204 = vadd.xlane.f32.xlu0 %v203
    %v205 = vpop.xlane.xlu0 %204
    %v206 = vsel %vm106, %v174, 0.0
    %207 = vadd.xlane.f32.xlu0 %v206
    %v208 = vpop.xlane.xlu0 %207
    %v209 = vsel %vm106, %v176, 0.0
    %210 = vadd.xlane.f32.xlu0 %v209
    %v211 = vpop.xlane.xlu0 %210
    %v212 = vsel %vm106, %v178, 0.0
    %213 = vadd.xlane.f32.xlu0 %v212
    %v214 = vpop.xlane.xlu0 %213
    %v215 = vsel %vm106, %v180, 0.0
    %216 = vadd.xlane.f32.xlu0 %v215
    %v217 = vpop.xlane.xlu0 %216
    %v218 = vsel %vm106, %v182, 0.0
    %219 = vadd.xlane.f32.xlu0 %v218
    %v220 = vpop.xlane.xlu0 %219
    %v221 = vsel %vm106, %v184, 0.0
    %222 = vadd.xlane.f32.xlu0 %v221
    %v223 = vpop.xlane.xlu0 %222
    %v224 = vlog2.pop %v187
    %v225 = vmul.f32 %v224, 0.6931472
    %v226 = vlog2.pop %v190
    %v227 = vmul.f32 %v226, 0.6931472
    %v228 = vlog2.pop %v193
    %v229 = vmul.f32 %v228, 0.6931472
    %v230 = vlog2.pop %v196
    %v231 = vmul.f32 %v230, 0.6931472
    %v232 = vlog2.pop %v199
    %v233 = vmul.f32 %v232, 0.6931472
    %v234 = vlog2.pop %v202
    %v235 = vmul.f32 %v234, 0.6931472
    %v236 = vlog2.pop %v205
    %v237 = vmul.f32 %v236, 0.6931472
    %v238 = vlog2.pop %v208
    %v239 = vmul.f32 %v238, 0.6931472
    %v240 = vlog2.pop %v211
    %v241 = vmul.f32 %v240, 0.6931472
    %v242 = vlog2.pop %v214
    %v243 = vmul.f32 %v242, 0.6931472
    %v244 = vlog2.pop %v217
    %v245 = vmul.f32 %v244, 0.6931472
    %v246 = vlog2.pop %v220
    %v247 = vmul.f32 %v246, 0.6931472
    %v248 = vlog2.pop %v223
    %v249 = vmul.f32 %v248, 0.6931472
    %v250 = vadd.f32 %v109, %v225
    %v251 = vadd.f32 %v112, %v227
    %v252 = vadd.f32 %v115, %v229
    %v253 = vadd.f32 %v118, %v231
    %v254 = vadd.f32 %v121, %v233
    %v255 = vadd.f32 %v124, %v235
    %v256 = vadd.f32 %v127, %v237
    %v257 = vadd.f32 %v130, %v239
    %v258 = vadd.f32 %v133, %v241
    %v259 = vadd.f32 %v136, %v243
    %v260 = vadd.f32 %v139, %v245
    %v261 = vadd.f32 %v142, %v247
    %v262 = vadd.f32 %v145, %v249
    %v263 = vlaneseq
    %v264 = vand.u32 %v263, 127
    %265 = vset.pattern.permute.xlu0 0
    %266 = vperm.xlu0 %265, %v25
    %v267 = vpop.permute.xlu0 %266
    %268 = vset.pattern.permute.xlu0 0
    %269 = vperm.xlu0 %268, %v26
    %v270 = vpop.permute.xlu0 %269
    %271 = vset.pattern.permute.xlu0 0
    %272 = vperm.xlu0 %271, %v27
    %v273 = vpop.permute.xlu0 %272
    %274 = vset.pattern.permute.xlu0 0
    %275 = vperm.xlu0 %274, %v28
    %v276 = vpop.permute.xlu0 %275
    %277 = vset.pattern.permute.xlu0 0
    %278 = vperm.xlu0 %277, %v29
    %v279 = vpop.permute.xlu0 %278
    %280 = vset.pattern.permute.xlu0 0
    %281 = vperm.xlu0 %280, %v30
    %v282 = vpop.permute.xlu0 %281
    %283 = vset.pattern.permute.xlu0 0
    %284 = vperm.xlu0 %283, %v31
    %v285 = vpop.permute.xlu0 %284
    %286 = vset.pattern.permute.xlu0 0
    %287 = vperm.xlu0 %286, %v32
    %v288 = vpop.permute.xlu0 %287
    %289 = vset.pattern.permute.xlu0 0
    %290 = vperm.xlu0 %289, %v33
    %v291 = vpop.permute.xlu0 %290
    %292 = vset.pattern.permute.xlu0 0
    %293 = vperm.xlu0 %292, %v34
    %v294 = vpop.permute.xlu0 %293
    %295 = vset.pattern.permute.xlu0 0
    %296 = vperm.xlu0 %295, %v35
    %v297 = vpop.permute.xlu0 %296
    %298 = vset.pattern.permute.xlu0 0
    %299 = vperm.xlu0 %298, %v36
    %v300 = vpop.permute.xlu0 %299
    %301 = vset.pattern.permute.xlu0 0
    %302 = vperm.xlu0 %301, %v37
    %v303 = vpop.permute.xlu0 %302
    %vm304 = vcmp.eq.s32.totalorder %v264, %v267
    %vm305 = vcmp.eq.s32.totalorder %v264, %v270
    %vm306 = vcmp.eq.s32.totalorder %v264, %v273
    %vm307 = vcmp.eq.s32.totalorder %v264, %v276
    %vm308 = vcmp.eq.s32.totalorder %v264, %v279
    %vm309 = vcmp.eq.s32.totalorder %v264, %v282
    %vm310 = vcmp.eq.s32.totalorder %v264, %v285
    %vm311 = vcmp.eq.s32.totalorder %v264, %v288
    %vm312 = vcmp.eq.s32.totalorder %v264, %v291
    %vm313 = vcmp.eq.s32.totalorder %v264, %v294
    %vm314 = vcmp.eq.s32.totalorder %v264, %v297
    %vm315 = vcmp.eq.s32.totalorder %v264, %v300
    %vm316 = vcmp.eq.s32.totalorder %v264, %v303
    %v317 = vsel %vm304, %v12, 0.0
    %v318 = vsel %vm305, %v13, 0.0
    %v319 = vsel %vm306, %v14, 0.0
    %v320 = vsel %vm307, %v15, 0.0
    %v321 = vsel %vm308, %v16, 0.0
    %v322 = vsel %vm309, %v17, 0.0
    %v323 = vsel %vm310, %v18, 0.0
    %v324 = vsel %vm311, %v19, 0.0
    %v325 = vsel %vm312, %v20, 0.0
    %v326 = vsel %vm313, %v21, 0.0
    %v327 = vsel %vm314, %v22, 0.0
    %v328 = vsel %vm315, %v23, 0.0
    %v329 = vsel %vm316, %v24, 0.0
    %v330 = vsel %vm106, %v317, 0.0
    %331 = vadd.xlane.f32.xlu0 %v330
    %v332 = vpop.xlane.xlu0 %331
    %v333 = vsel %vm106, %v318, 0.0
    %334 = vadd.xlane.f32.xlu0 %v333
    %v335 = vpop.xlane.xlu0 %334
    %v336 = vsel %vm106, %v319, 0.0
    %337 = vadd.xlane.f32.xlu0 %v336
    %v338 = vpop.xlane.xlu0 %337
    %v339 = vsel %vm106, %v320, 0.0
    %340 = vadd.xlane.f32.xlu0 %v339
    %v341 = vpop.xlane.xlu0 %340
    %v342 = vsel %vm106, %v321, 0.0
    %343 = vadd.xlane.f32.xlu0 %v342
    %v344 = vpop.xlane.xlu0 %343
    %v345 = vsel %vm106, %v322, 0.0
    %346 = vadd.xlane.f32.xlu0 %v345
    %v347 = vpop.xlane.xlu0 %346
    %v348 = vsel %vm106, %v323, 0.0
    %349 = vadd.xlane.f32.xlu0 %v348
    %v350 = vpop.xlane.xlu0 %349
    %v351 = vsel %vm106, %v324, 0.0
    %352 = vadd.xlane.f32.xlu0 %v351
    %v353 = vpop.xlane.xlu0 %352
    %v354 = vsel %vm106, %v325, 0.0
    %355 = vadd.xlane.f32.xlu0 %v354
    %v356 = vpop.xlane.xlu0 %355
    %v357 = vsel %vm106, %v326, 0.0
    %358 = vadd.xlane.f32.xlu0 %v357
    %v359 = vpop.xlane.xlu0 %358
    %v360 = vsel %vm106, %v327, 0.0
    %361 = vadd.xlane.f32.xlu0 %v360
    %v362 = vpop.xlane.xlu0 %361
    %v363 = vsel %vm106, %v328, 0.0
    %364 = vadd.xlane.f32.xlu0 %v363
    %v365 = vpop.xlane.xlu0 %364
    %v366 = vsel %vm106, %v329, 0.0
    %367 = vadd.xlane.f32.xlu0 %v366
    %v368 = vpop.xlane.xlu0 %367
    %v369 = vsub.f32 %v250, %v332
    %v370 = vsub.f32 %v251, %v335
    %v371 = vsub.f32 %v252, %v338
    %v372 = vsub.f32 %v253, %v341
    %v373 = vsub.f32 %v254, %v344
    %v374 = vsub.f32 %v255, %v347
    %v375 = vsub.f32 %v256, %v350
    %v376 = vsub.f32 %v257, %v353
    %v377 = vsub.f32 %v258, %v356
    %v378 = vsub.f32 %v259, %v359
    %v379 = vsub.f32 %v260, %v362
    %v380 = vsub.f32 %v261, %v365
    %v381 = vsub.f32 %v262, %v368
    %v382 = vsel %vm93, %v369, 0.0
    %v383 = vsel %vm94, %v370, 0.0
    %v384 = vsel %vm95, %v371, 0.0
    %v385 = vsel %vm96, %v372, 0.0
    %v386 = vsel %vm97, %v373, 0.0
    %v387 = vsel %vm98, %v374, 0.0
    %v388 = vsel %vm99, %v375, 0.0
    %v389 = vsel %vm100, %v376, 0.0
    %v390 = vsel %vm101, %v377, 0.0
    %v391 = vsel %vm102, %v378, 0.0
    %v392 = vsel %vm103, %v379, 0.0
    %v393 = vsel %vm104, %v380, 0.0
    %v394 = vsel %vm105, %v381, 0.0
    %vm395 = vcmask 7168
    %v396 = vsel %vm395, %v382, 0.0
    %v397 = vsel %vm395, %v383, 0.0
    %v398 = vadd.f32 %v396, %v397
    %v399 = vsel %vm395, %v384, 0.0
    %v400 = vadd.f32 %v398, %v399
    %v401 = vsel %vm395, %v385, 0.0
    %v402 = vadd.f32 %v400, %v401
    %v403 = vsel %vm395, %v386, 0.0
    %v404 = vadd.f32 %v402, %v403
    %v405 = vsel %vm395, %v387, 0.0
    %v406 = vadd.f32 %v404, %v405
    %v407 = vsel %vm395, %v388, 0.0
    %v408 = vadd.f32 %v406, %v407
    %v409 = vsel %vm395, %v389, 0.0
    %v410 = vadd.f32 %v408, %v409
    %v411 = vsel %vm395, %v390, 0.0
    %v412 = vadd.f32 %v410, %v411
    %v413 = vsel %vm395, %v391, 0.0
    %v414 = vadd.f32 %v412, %v413
    %v415 = vsel %vm395, %v392, 0.0
    %v416 = vadd.f32 %v414, %v415
    %v417 = vsel %vm395, %v393, 0.0
    %v418 = vadd.f32 %v416, %v417
    %v419 = vsel %vm395, %v394, 0.0
    %v420 = vadd.f32 %v418, %v419
    %421 = vadd.xlane.f32.xlu0 %v420
    %v422 = vpop.xlane.xlu0 %421
    %v423 = vrot.slane %v422, 4
    %v424 = vadd.f32 %v422, %v423
    %v425 = vrot.slane %v424, 2
    %v426 = vadd.f32 %v424, %v425
    %v427 = vrot.slane %v426, 1
    %v428 = vadd.f32 %v426, %v427
    %s429 = vtos %v428
    %s430 = scalar_lea.smem [#allocation2], 0
    %431 = sst [smem:[%s430]] %s429
    // Predicated region
    $region10: #{tpu_custom_call.1} parent=1 // pred_check
      _
    $region11: #{tpu_custom_call.1} parent=1 // pred_check_branch
      %433 = sbr.rel (0) target = $region13
    $region12: #{tpu_custom_call.1} parent=1 // pred_region
      %s435 = ssub.s32 16, 16
      %436 = vsyncadd [#allocation3], %s435
      %439 = dma.smem_to_hbm [#allocation2], 16, %s2, [#allocation3]
    $region13: #{tpu_custom_call.1} parent=1 // pred_fallthru
      _
    // Predicated region
    $region14: #{tpu_custom_call.1} parent=1 // pred_check
      _
    $region15: #{tpu_custom_call.1} parent=1 // pred_check_branch
      %441 = sbr.rel (0) target = $region17
    $region16: #{tpu_custom_call.1} parent=1 // pred_region
      %442 = dma.done [#allocation3], 16
    $region17: #{tpu_custom_call.1} parent=1 // pred_fallthru
      _
    %443 = sfence
    %444 = vsyncpa [#allocation3], 1

</llo_original>
